<compile_context>
chip_gen: v6e
topology: v6e:2x2x1
jax: 0.10.0
libtpu: 0.0.40
codegen_flags: <defaults>
</compile_context>

<pallas_src>
import functools

import jax
import jax.numpy as jnp
from jax.experimental import pallas as pl
from jax.experimental.pallas import tpu as pltpu

# 32x32 hypercomplex multiplication table from the reference implementation.
kernel_list = [[1, 2, 3, 4, 5, 6, 7, 8, 9, 10, 11, 12, 13, 14, 15, 16, 17, 18, 19, 20, 21, 22, 23, 24, 25, 26, 27, 28, 29, 30, 31, 32], [2, -1, 4, -3, 6, -5, -8, 7, 10, -9, -12, 11, -14, 13, 16, -15, 18, -17, -20, 19, -22, 21, 24, -23, -26, 25, 28, -27, 30, -29, -32, 31], [3, -4, -1, 2, 7, 8, -5, -6, 11, 12, -9, -10, -15, -16, 13, 14, 19, 20, -17, -18, -23, -24, 21, 22, -27, -28, 25, 26, 31, 32, -29, -30], [4, 3, -2, -1, 8, -7, 6, -5, 12, -11, 10, -9, -16, 15, -14, 13, 20, -19, 18, -17, -24, 23, -22, 21, -28, 27, -26, 25, 32, -31, 30, -29], [5, -6, -7, -8, -1, 2, 3, 4, 13, 14, 15, 16, -9, -10, -11, -12, 21, 22, 23, 24, -17, -18, -19, -20, -29, -30, -31, -32, 25, 26, 27, 28], [6, 5, -8, 7, -2, -1, -4, 3, 14, -13, 16, -15, 10, -9, 12, -11, 22, -21, 24, -23, 18, -17, 20, -19, -30, 29, -32, 31, -26, 25, -28, 27], [7, 8, 5, -6, -3, 4, -1, -2, 15, -16, -13, 14, 11, -12, -9, 10, 23, -24, -21, 22, 19, -20, -17, 18, -31, 32, 29, -30, -27, 28, 25, -26], [8, -7, 6, 5, -4, -3, 2, -1, 16, 15, -14, -13, 12, 11, -10, -9, 24, 23, -22, -21, 20, 19, -18, -17, -32, -31, 30, 29, -28, -27, 26, 25], [9, -10, -11, -12, -13, -14, -15, -16, -1, 2, 3, 4, 5, 6, 7, 8, 25, 26, 27, 28, 29, 30, 31, 32, -17, -18, -19, -20, -21, -22, -23, -24], [10, 9, -12, 11, -14, 13, 16, -15, -2, -1, -4, 3, -6, 5, 8, -7, 26, -25, 28, -27, 30, -29, -32, 31, 18, -17, 20, -19, 22, -21, -24, 23], [11, 12, 9, -10, -15, -16, 13, 14, -3, 4, -1, -2, -7, -8, 5, 6, 27, -28, -25, 26, 31, 32, -29, -30, 19, -20, -17, 18, 23, 24, -21, -22], [12, -11, 10, 9, -16, 15, -14, 13, -4, -3, 2, -1, -8, 7, -6, 5, 28, 27, -26, -25, 32, -31, 30, -29, 20, 19, -18, -17, 24, -23, 22, -21], [13, 14, 15, 16, 9, -10, -11, -12, -5, 6, 7, 8, -1, -2, -3, -4, 29, -30, -31, -32, -25, 26, 27, 28, 21, -22, -23, -24, -17, 18, 19, 20], [14, -13, 16, -15, 10, 9, 12, -11, -6, -5, 8, -7, 2, -1, 4, -3, 30, 29, -32, 31, -26, -25, -28, 27, 22, 21, -24, 23, -18, -17, -20, 19], [15, -16, -13, 14, 11, -12, 9, 10, -7, -8, -5, 6, 3, -4, -1, 2, 31, 32, 29, -30, -27, 28, -25, -26, 23, 24, 21, -22, -19, 20, -17, -18], [16, 15, -14, -13, 12, 11, -10, 9, -8, 7, -6, -5, 4, 3, -2, -1, 32, -31, 30, 29, -28, -27, 26, -25, 24, -23, 22, 21, -20, -19, 18, -17], [17, -18, -19, -20, -21, -22, -23, -24, -25, -26, -27, -28, -29, -30, -31, -32, -1, 2, 3, 4, 5, 6, 7, 8, 9, 10, 11, 12, 13, 14, 15, 16], [18, 17, -20, 19, -22, 21, 24, -23, -26, 25, 28, -27, 30, -29, -32, 31, -2, -1, -4, 3, -6, 5, 8, -7, -10, 9, 12, -11, 14, -13, -16, 15], [19, 20, 17, -18, -23, -24, 21, 22, -27, -28, 25, 26, 31, 32, -29, -30, -3, 4, -1, -2, -7, -8, 5, 6, -11, -12, 9, 10, 15, 16, -13, -14], [20, -19, 18, 17, -24, 23, -22, 21, -28, 27, -26, 25, 32, -31, 30, -29, -4, -3, 2, -1, -8, 7, -6, 5, -12, 11, -10, 9, 16, -15, 14, -13], [21, 22, 23, 24, 17, -18, -19, -20, -29, -30, -31, -32, 25, 26, 27, 28, -5, 6, 7, 8, -1, -2, -3, -4, -13, -14, -15, -16, 9, 10, 11, 12], [22, -21, 24, -23, 18, 17, 20, -19, -30, 29, -32, 31, -26, 25, -28, 27, -6, -5, 8, -7, 2, -1, 4, -3, -14, 13, -16, 15, -10, 9, -12, 11], [23, -24, -21, 22, 19, -20, 17, 18, -31, 32, 29, -30, -27, 28, 25, -26, -7, -8, -5, 6, 3, -4, -1, 2, -15, 16, 13, -14, -11, 12, 9, -10], [24, 23, -22, -21, 20, 19, -18, 17, -32, -31, 30, 29, -28, -27, 26, 25, -8, 7, -6, -5, 4, 3, -2, -1, -16, -15, 14, 13, -12, -11, 10, 9], [25, 26, 27, 28, 29, 30, 31, 32, 17, -18, -19, -20, -21, -22, -23, -24, -9, 10, 11, 12, 13, 14, 15, 16, -1, -2, -3, -4, -5, -6, -7, -8], [26, -25, 28, -27, 30, -29, -32, 31, 18, 17, 20, -19, 22, -21, -24, 23, -10, -9, 12, -11, 14, -13, -16, 15, 2, -1, 4, -3, 6, -5, -8, 7], [27, -28, -25, 26, 31, 32, -29, -30, 19, -20, 17, 18, 23, 24, -21, -22, -11, -12, -9, 10, 15, 16, -13, -14, 3, -4, -1, 2, 7, 8, -5, -6], [28, 27, -26, -25, 32, -31, 30, -29, 20, 19, -18, 17, 24, -23, 22, -21, -12, 11, -10, -9, 16, -15, 14, -13, 4, 3, -2, -1, 8, -7, 6, -5], [29, -30, -31, -32, -25, 26, 27, 28, 21, -22, -23, -24, 17, 18, 19, 20, -13, -14, -15, -16, -9, 10, 11, 12, 5, -6, -7, -8, -1, 2, 3, 4], [30, 29, -32, 31, -26, -25, -28, 27, 22, 21, -24, 23, -18, 17, -20, 19, -14, 13, -16, 15, -10, -9, -12, 11, 6, 5, -8, 7, -2, -1, -4, 3], [31, 32, 29, -30, -27, 28, -25, -26, 23, 24, 21, -22, -19, 20, 17, -18, -15, 16, 13, -14, -11, 12, -9, -10, 7, 8, 5, -6, -3, 4, -1, -2], [32, -31, 30, 29, -28, -27, 26, -25, 24, -23, 22, 21, -20, -19, 18, 17, -16, -15, 14, 13, -12, -11, 10, -9, 8, -7, 6, 5, -4, -3, 2, -1]]

_BN_EPS = 1e-5
_FUSED_MAX_NODES = 1024          # fused single-kernel path when n_pad <= 1024 ...
_FUSED_MAX_FEATS = 256           # ... and fo_pad <= 256 (working set ~5-6 MiB, fits all gens)
_RESIDENT_SUPPORT_BYTES = 8 * 1024 * 1024   # keep resident support under v5e's 16 MiB scoped VMEM


# ------------------------------------------------------------------------------------
# hamilton construction (wrapper-side JAX glue)
# ------------------------------------------------------------------------------------
def make_quaternion_mul(weight):
    """Table-driven construction: one gather + sign multiply (vs ~1056 slice/concat ops)."""
    rows, cols = weight.shape
    dim = cols // 32
    table = jnp.asarray(kernel_list, dtype=jnp.int32)            # (32, 32), [j, i]
    idx = jnp.abs(table) - 1                                     # which sub-block
    sign = jnp.sign(table).astype(weight.dtype)                  # +/- 1
    w_split = weight.reshape(rows, 32, dim).transpose(1, 0, 2)   # (32, rows, dim)
    gathered = w_split[idx]                                      # (32, 32, rows, dim) [j, i, r, d]
    ham = sign[:, :, None, None] * gathered                      # (32, 32, rows, dim)
    ham = ham.transpose(0, 2, 1, 3).reshape(32 * rows, 32 * dim)  # (32*rows, cols)
    return ham


def _make_quaternion_mul_loops(weight):
    """Original slice/concat construction (used only to cross-check the table version)."""
    dim = weight.shape[1] // 32
    dim_list = [weight[:, k * dim:(k + 1) * dim] for k in range(32)]
    cols = []
    for i in range(32):
        rows_ = []
        for j in range(32):
            idx = kernel_list[j][i]
            rows_.append(dim_list[idx - 1] if idx > 0 else -dim_list[-idx - 1])
        cols.append(jnp.concatenate(rows_, axis=0))
    return jnp.concatenate(cols, axis=1)


# ------------------------------------------------------------------------------------
# Layout helpers
# ------------------------------------------------------------------------------------
def _round_up(x, m):
    return ((x + m - 1) // m) * m


def _resident_spec(block_shape, index_map):
    """Constant-index (resident) operand: single-buffer it when the jax version allows."""
    try:
        return pl.BlockSpec(block_shape, index_map, pipeline_mode=pl.Buffered(1))
    except (AttributeError, TypeError, ValueError):
        return pl.BlockSpec(block_shape, index_map)


def _choose_row_tile(n, row_tile):
    n128 = _round_up(n, 128)
    tm = min(_round_up(row_tile, 128), n128)
    # keep >= 2 row tiles so the "parallel" axis can feed both v7x TensorCores
    if n128 > 128 and tm >= n128:
        tm = _round_up(n128 // 2, 128)
    return tm


def _elementwise_tile(n_pad):
    """Largest 128-multiple tile (<=1024) that divides n_pad, for the mem-bound kernels."""
    for t in (1024, 512, 256, 128):
        if n_pad % t == 0:
            return t
    return n_pad


def _layout(n, out_features, row_tile):
    fo_pad = _round_up(max(out_features, 128), 128)   # lane-dense output
    if n <= _FUSED_MAX_NODES and fo_pad <= _FUSED_MAX_FEATS:
        return _round_up(n, 128), fo_pad, None, True
    tm = _choose_row_tile(n, row_tile)
    return _round_up(n, tm), fo_pad, tm, False


def prepare_adjacency(adj, *, out_features, row_tile=256):
    """Pad + cast the dense adjacency to bf16 ONCE per graph.

    Passing the result to qgnn_layer_v2_forward skips the per-call N^2 recast/pad
    (which otherwise roughly doubles the layer's N^2 HBM traffic).
    """
    n = adj.shape[0]
    n_pad, _, _, _ = _layout(n, out_features, row_tile)
    out = jnp.zeros((n_pad, n_pad), jnp.bfloat16)
    return out.at[:n, :n].set(adj.astype(jnp.bfloat16))


# ------------------------------------------------------------------------------------
# Pallas kernels
# ------------------------------------------------------------------------------------
def _fused_small_kernel(x_ref, h_ref, adj_ref, gamma_ref, beta_ref, o_ref, *, inv_n):
    """Whole layer in one VMEM-resident kernel (small graphs)."""
    sup = jnp.dot(x_ref[...], h_ref[...],
                  preferred_element_type=jnp.float32).astype(jnp.bfloat16)
    pre = jnp.dot(adj_ref[...], sup, preferred_element_type=jnp.float32)
    # BN batch statistics over the real rows (padded adj rows are zero -> pre rows zero).
    mean = jnp.sum(pre, axis=0, keepdims=True) * inv_n
    var = jnp.maximum(jnp.sum(pre * pre, axis=0, keepdims=True) * inv_n - mean * mean, 0.0)
    scale = gamma_ref[...] * jax.lax.rsqrt(var + _BN_EPS)
    shift = beta_ref[...] - mean * scale
    o_ref[...] = jnp.tanh(pre * scale + shift)


def _support_kernel(x_ref, h_ref, sup_ref):
    """support[i] = x[i] @ hamilton  (bf16 inputs, f32 accumulate, bf16 out)."""
    sup_ref[...] = jnp.dot(x_ref[...], h_ref[...],
                           preferred_element_type=jnp.float32).astype(sup_ref.dtype)


def _aggregate_kernel(adj_ref, sup_ref, pre_ref, stats_ref, acc_ref, *, support_resident):
    """pre[i] = sum_k adj[i,k] @ support[k]; also emits per-row-tile column BN stats.

    Grid = (row_tiles, k_tiles); k (reduction) last / "arbitrary", row tiles "parallel".
    acc_ref is the f32 VMEM accumulator; `pre` is written back as bf16 but the BN
    partial stats are taken from the f32 accumulator before the cast.
    """
    k = pl.program_id(1)
    tk = adj_ref.shape[1]

    @pl.when(k == 0)
    def _init():
        acc_ref[...] = jnp.zeros_like(acc_ref)

    if support_resident:
        start = pl.multiple_of(k * tk, tk)
        sup_blk = sup_ref[pl.ds(start, tk), :]
    else:
        sup_blk = sup_ref[...]
    acc_ref[...] += jnp.dot(adj_ref[...], sup_blk, preferred_element_type=jnp.float32)

    @pl.when(k == pl.num_programs(1) - 1)
    def _finalize():
        acc = acc_ref[...]
        pre_ref[...] = acc.astype(pre_ref.dtype)          # bf16 writeback
        colsum = jnp.sum(acc, axis=0, keepdims=True)      # f32 stats (single pass)
        colsumsq = jnp.sum(acc * acc, axis=0, keepdims=True)
        row_id = jax.lax.broadcasted_iota(jnp.int32, (8, acc.shape[1]), 0)
        stats_ref[0] = jnp.where(row_id == 0, colsum,
                                 jnp.where(row_id == 1, colsumsq, 0.0))


def _bn_tanh_kernel(pre_ref, scale_ref, shift_ref, o_ref):
    """Fused BatchNorm apply (single FMA-shaped scale/shift) + tanh; bf16 in, f32 out."""
    pre = pre_ref[...].astype(jnp.float32)
    o_ref[...] = jnp.tanh(pre * scale_ref[...] + shift_ref[...])


# ------------------------------------------------------------------------------------
# Wrapper
# ------------------------------------------------------------------------------------
def qgnn_layer_v2_forward(x, adj, weight, gamma, beta, *, row_tile=256,
                          support_resident=None):
    hamilton = make_quaternion_mul(weight)            # (32*in_features//4, out_features) f32
    n, fh = x.shape
    fo = hamilton.shape[1]
    assert hamilton.shape[0] == fh, "input dim must equal 32 * (in_features // 4)"

    n_pad, fo_pad, tm, fused = _layout(n, fo, row_tile)

    # bf16 MXU inputs (f32 accumulation); zero-pad node / feature dims.
    x_p = jnp.zeros((n_pad, fh), jnp.bfloat16).at[:n, :].set(x.astype(jnp.bfloat16))
    h_p = jnp.zeros((fh, fo_pad), jnp.bfloat16).at[:, :fo].set(hamilton.astype(jnp.bfloat16))
    if adj.dtype == jnp.bfloat16 and adj.shape == (n_pad, n_pad):
        adj_p = adj                                   # pre-padded via prepare_adjacency()
    else:
        adj_p = jnp.zeros((n_pad, n_pad), jnp.bfloat16).at[
            :adj.shape[0], :adj.shape[1]].set(adj.astype(jnp.bfloat16))
    gamma_p = jnp.ones((fo_pad,), jnp.float32).at[:fo].set(gamma.astype(jnp.float32))
    beta_p = jnp.zeros((fo_pad,), jnp.float32).at[:fo].set(beta.astype(jnp.float32))

    # ---------------- small-graph path: one fully fused kernel ------------------------
    if fused:
        out = pl.pallas_call(
            functools.partial(_fused_small_kernel, inv_n=1.0 / n),
            out_shape=jax.ShapeDtypeStruct((n_pad, fo_pad), jnp.float32),
            cost_estimate=pl.CostEstimate(
                flops=2 * n_pad * fh * fo_pad + 2 * n_pad * n_pad * fo_pad,
                transcendentals=n_pad * fo_pad,
                bytes_accessed=(n_pad * fh + fh * fo_pad + n_pad * n_pad) * 2
                               + n_pad * fo_pad * 4 + fo_pad * 8),
        )(x_p, h_p, adj_p, gamma_p.reshape(1, fo_pad), beta_p.reshape(1, fo_pad))
        return out[:n, :fo]

    # ---------------- tiled path -------------------------------------------------------
    tk = tm
    n_row_tiles = n_pad // tm
    n_k_tiles = n_pad // tk
    te = _elementwise_tile(n_pad)                     # big tiles for the mem-bound kernels

    # --- kernel 1: support = x @ hamilton (row-tiled, hamilton resident) --------------
    support = pl.pallas_call(
        _support_kernel,
        out_shape=jax.ShapeDtypeStruct((n_pad, fo_pad), jnp.bfloat16),
        grid_spec=pltpu.PrefetchScalarGridSpec(
            num_scalar_prefetch=0, grid=(n_pad // te,),
            in_specs=[pl.BlockSpec((te, fh), lambda i: (i, 0)),
                      _resident_spec((fh, fo_pad), lambda i: (0, 0))],
            out_specs=pl.BlockSpec((te, fo_pad), lambda i: (i, 0))),
        compiler_params=pltpu.CompilerParams(dimension_semantics=("parallel",)),
        cost_estimate=pl.CostEstimate(
            flops=2 * n_pad * fh * fo_pad, transcendentals=0,
            bytes_accessed=(n_pad * fh + fh * fo_pad + n_pad * fo_pad) * 2),
    )(x_p, h_p)

    # --- kernel 2: pre = adj @ support, + per-row-tile column sums / sums-of-squares --
    support_bytes = n_pad * fo_pad * 2
    if support_resident is None:
        support_resident = support_bytes <= _RESIDENT_SUPPORT_BYTES
    if support_resident:
        sup_spec = _resident_spec((n_pad, fo_pad), lambda i, k: (0, 0))
        sup_read_bytes = n_pad * fo_pad * 2
    else:
        # VMEM-gated fallback (e.g. big N * fo on v7x's 64 MiB VMEM): per-k-tile blocks,
        # re-read amortized by the 256+ row tile.
        sup_spec = pl.BlockSpec((tk, fo_pad), lambda i, k: (k, 0))
        sup_read_bytes = n_row_tiles * n_pad * fo_pad * 2

    pre, stats = pl.pallas_call(
        functools.partial(_aggregate_kernel, support_resident=support_resident),
        out_shape=(jax.ShapeDtypeStruct((n_pad, fo_pad), jnp.bfloat16),
                   jax.ShapeDtypeStruct((n_row_tiles, 8, fo_pad), jnp.float32)),
        grid_spec=pltpu.PrefetchScalarGridSpec(
            num_scalar_prefetch=0, grid=(n_row_tiles, n_k_tiles),
            in_specs=[pl.BlockSpec((tm, tk), lambda i, k: (i, k)),
                      sup_spec],
            out_specs=(pl.BlockSpec((tm, fo_pad), lambda i, k: (i, 0)),
                       pl.BlockSpec((1, 8, fo_pad), lambda i, k: (i, 0, 0))),
            scratch_shapes=[pltpu.VMEM((tm, fo_pad), jnp.float32)]),
        compiler_params=pltpu.CompilerParams(
            dimension_semantics=("parallel", "arbitrary")),
        cost_estimate=pl.CostEstimate(
            flops=2 * n_pad * n_pad * fo_pad, transcendentals=0,
            bytes_accessed=(n_pad * n_pad * 2 + sup_read_bytes
                            + n_pad * fo_pad * 2 + n_row_tiles * 8 * fo_pad * 4)),
    )(adj_p, support)

    # --- tiny JAX glue: reduce stats over row tiles, build fused BN scale/shift -------
    colsum = jnp.sum(stats[:, 0, :], axis=0)
    colsumsq = jnp.sum(stats[:, 1, :], axis=0)
    mean = colsum / n                                           # padding rows contribute 0
    var = jnp.maximum(colsumsq / n - mean * mean, 0.0)          # biased variance (training BN)
    # TODO(synk): single-pass E[x^2]-E[x]^2 in f32 can cancel badly when |mean| >> std.
    scale = gamma_p * jax.lax.rsqrt(var + _BN_EPS)
    shift = beta_p - mean * scale

    # --- kernel 3: y = tanh(pre * scale + shift) --------------------------------------
    out = pl.pallas_call(
        _bn_tanh_kernel,
        out_shape=jax.ShapeDtypeStruct((n_pad, fo_pad), jnp.float32),
        grid_spec=pltpu.PrefetchScalarGridSpec(
            num_scalar_prefetch=0, grid=(n_pad // te,),
            in_specs=[pl.BlockSpec((te, fo_pad), lambda i: (i, 0)),
                      _resident_spec((1, fo_pad), lambda i: (0, 0)),
                      _resident_spec((1, fo_pad), lambda i: (0, 0))],
            out_specs=pl.BlockSpec((te, fo_pad), lambda i: (i, 0))),
        compiler_params=pltpu.CompilerParams(dimension_semantics=("parallel",)),
        cost_estimate=pl.CostEstimate(
            flops=2 * n_pad * fo_pad, transcendentals=n_pad * fo_pad,
            bytes_accessed=n_pad * fo_pad * 6 + fo_pad * 8),
    )(pre, scale.reshape(1, fo_pad), shift.reshape(1, fo_pad))

    return out[:n, :fo]
    # TODO(synk): BatchNorm1d running_mean/running_var momentum updates are a training
    # side effect that does not affect this forward output; not emitted.


# ------------------------------------------------------------------------------------
# Reference (full f32) and test
# ------------------------------------------------------------------------------------
def _reference(x, adj, weight, gamma, beta):
    hamilton = make_quaternion_mul(weight)
    out = adj @ (x @ hamilton)
    mean = jnp.mean(out, axis=0, keepdims=True)
    var = jnp.mean((out - mean) ** 2, axis=0, keepdims=True)
    normed = (out - mean) / jnp.sqrt(var + _BN_EPS) * gamma[None, :] + beta[None, :]
    return jnp.tanh(normed)


def _init_params(key, in_features, out_features):
    rows, cols = in_features // 4, out_features
    stdv = (6.0 / (rows + cols)) ** 0.5
    weight = jax.random.uniform(key, (rows, cols), dtype=jnp.float32,
                                minval=-stdv, maxval=stdv)
    gamma = jnp.ones((out_features,), dtype=jnp.float32)
    beta = jnp.zeros((out_features,), dtype=jnp.float32)
    return weight, gamma, beta


if __name__ == "__main__":
    in_features = 16
    out_features = 64
    feat_in = 32 * (in_features // 4)   # 128

    key = jax.random.PRNGKey(0)
    k_x1, k_adj1, k_w, k_x2, k_adj2 = jax.random.split(key, 5)
    weight, gamma, beta = _init_params(k_w, in_features, out_features)

    # Sanity: table-driven hamilton == original slice/concat construction (bit exact).
    assert jnp.array_equal(make_quaternion_mul(weight), _make_quaternion_mul_loops(weight))

    # ---------------- test 1: small graph (N=64) -> fused single-kernel path ----------
    n1 = 64
    x1 = jax.random.normal(k_x1, (n1, feat_in), dtype=jnp.float32)
    adj1_raw = jax.random.uniform(k_adj1, (n1, n1), dtype=jnp.float32)
    adj1 = adj1_raw / jnp.sum(adj1_raw, axis=1, keepdims=True)

    fwd = jax.jit(qgnn_layer_v2_forward)
    out1 = jax.block_until_ready(fwd(x1, adj1, weight, gamma, beta))
    ref1 = _reference(x1, adj1, weight, gamma, beta)
    assert out1.shape == (n1, out_features)
    assert jnp.allclose(out1, ref1, atol=5e-2, rtol=5e-2), \
        f"fused path: max abs diff {float(jnp.max(jnp.abs(out1 - ref1)))}"

    # ---------------- test 2: larger graph (N=1280) -> tiled 3-kernel path ------------
    n2 = 1280
    x2 = jax.random.normal(k_x2, (n2, feat_in), dtype=jnp.float32)
    mask = (jax.random.uniform(k_adj2, (n2, n2), dtype=jnp.float32) < 0.05).astype(jnp.float32)
    adj2 = mask + jnp.eye(n2, dtype=jnp.float32)
    adj2 = adj2 / jnp.sum(adj2, axis=1, keepdims=True)
    ref2 = _reference(x2, adj2, weight, gamma, beta)

    # (a) with the adjacency padded/cast once up front (hoisted out of the forward)
    adj2_prepared = jax.jit(
        functools.partial(prepare_adjacency, out_features=out_features))(adj2)
    out2 = jax.block_until_ready(fwd(x2, adj2_prepared, weight, gamma, beta))
    assert out2.shape == (n2, out_features)
    assert jnp.allclose(out2, ref2, atol=5e-2, rtol=5e-2), \
        f"tiled path (resident support): max abs diff {float(jnp.max(jnp.abs(out2 - ref2)))}"

    # (b) force the per-k-tile (non-resident) support fallback used when N*fo would
    #     blow past the VMEM budget (e.g. v7x's 64 MiB), to exercise that code path too.
    fwd_nonres = jax.jit(lambda x, a, w, g, b: qgnn_layer_v2_forward(
        x, a, w, g, b, support_resident=False))
    out2b = jax.block_until_ready(fwd_nonres(x2, adj2, weight, gamma, beta))
    assert jnp.allclose(out2b, ref2, atol=5e-2, rtol=5e-2), \
        f"tiled path (k-tile support): max abs diff {float(jnp.max(jnp.abs(out2b - ref2)))}"

    print("KERNEL_OK")
</pallas_src>

<mosaic_0001>
module attributes {stable_mosaic.version = 11 : i64} {
  func.func @_fused_small_kernel(%arg0: memref<128x128xbf16, #tpu.memory_space<vmem>>, %arg1: memref<128x128xbf16, #tpu.memory_space<vmem>>, %arg2: memref<128x128xbf16, #tpu.memory_space<vmem>>, %arg3: memref<1x128xf32, #tpu.memory_space<vmem>>, %arg4: memref<1x128xf32, #tpu.memory_space<vmem>>, %arg5: memref<128x128xf32, #tpu.memory_space<vmem>>) attributes {dimension_semantics = [], scalar_prefetch = 0 : i64, scratch_operands = 0 : i64, tpu.core_type = #tpu.core_type<tc>} {
    %c0 = arith.constant 0 : index
    %c0_0 = arith.constant 0 : index
    %0 = vector.load %arg0[%c0, %c0_0] : memref<128x128xbf16, #tpu.memory_space<vmem>>, vector<128x128xbf16>
    %c0_1 = arith.constant 0 : index
    %c0_2 = arith.constant 0 : index
    %1 = vector.load %arg1[%c0_1, %c0_2] : memref<128x128xbf16, #tpu.memory_space<vmem>>, vector<128x128xbf16>
    %cst = arith.constant dense<0.000000e+00> : vector<128x128xf32>
    %2 = tpu.matmul %0, %1, %cst {dimension_numbers = #tpu.dot_dimension_numbers<[1], [0], [0], [1], [0, 0, 1, 1], [], []>} : vector<128x128xbf16>, vector<128x128xbf16>, vector<128x128xf32> -> vector<128x128xf32>
    %3 = arith.truncf %2 : vector<128x128xf32> to vector<128x128xbf16>
    %c0_3 = arith.constant 0 : index
    %c0_4 = arith.constant 0 : index
    %4 = vector.load %arg2[%c0_3, %c0_4] : memref<128x128xbf16, #tpu.memory_space<vmem>>, vector<128x128xbf16>
    %cst_5 = arith.constant dense<0.000000e+00> : vector<128x128xf32>
    %5 = tpu.matmul %4, %3, %cst_5 {dimension_numbers = #tpu.dot_dimension_numbers<[1], [0], [0], [1], [0, 0, 1, 1], [], []>} : vector<128x128xbf16>, vector<128x128xbf16>, vector<128x128xf32> -> vector<128x128xf32>
    %cst_6 = arith.constant dense<0.000000e+00> : vector<128xf32>
    %6 = vector.multi_reduction <add>, %5, %cst_6 [0] : vector<128x128xf32> to vector<128xf32>
    %7 = vector.shape_cast %6 : vector<128xf32> to vector<1x128xf32>
    %cst_7 = arith.constant 1.562500e-02 : f32
    %8 = vector.broadcast %cst_7 : f32 to vector<1x128xf32>
    %9 = arith.mulf %7, %8 : vector<1x128xf32>
    %10 = arith.mulf %5, %5 : vector<128x128xf32>
    %cst_8 = arith.constant dense<0.000000e+00> : vector<128xf32>
    %11 = vector.multi_reduction <add>, %10, %cst_8 [0] : vector<128x128xf32> to vector<128xf32>
    %12 = vector.shape_cast %11 : vector<128xf32> to vector<1x128xf32>
    %cst_9 = arith.constant 1.562500e-02 : f32
    %13 = vector.broadcast %cst_9 : f32 to vector<1x128xf32>
    %14 = arith.mulf %12, %13 : vector<1x128xf32>
    %15 = arith.mulf %9, %9 : vector<1x128xf32>
    %16 = arith.subf %14, %15 : vector<1x128xf32>
    %cst_10 = arith.constant 0.000000e+00 : f32
    %17 = vector.broadcast %cst_10 : f32 to vector<1x128xf32>
    %18 = arith.maximumf %16, %17 : vector<1x128xf32>
    %c0_11 = arith.constant 0 : index
    %c0_12 = arith.constant 0 : index
    %19 = vector.load %arg3[%c0_11, %c0_12] : memref<1x128xf32, #tpu.memory_space<vmem>>, vector<1x128xf32>
    %cst_13 = arith.constant 9.99999974E-6 : f32
    %20 = vector.broadcast %cst_13 : f32 to vector<1x128xf32>
    %21 = arith.addf %18, %20 : vector<1x128xf32>
    %22 = math.rsqrt %21 : vector<1x128xf32>
    %23 = arith.mulf %19, %22 : vector<1x128xf32>
    %c0_14 = arith.constant 0 : index
    %c0_15 = arith.constant 0 : index
    %24 = vector.load %arg4[%c0_14, %c0_15] : memref<1x128xf32, #tpu.memory_space<vmem>>, vector<1x128xf32>
    %25 = arith.mulf %9, %23 : vector<1x128xf32>
    %26 = arith.subf %24, %25 : vector<1x128xf32>
    %27 = vector.broadcast %23 : vector<1x128xf32> to vector<128x128xf32>
    %28 = arith.mulf %5, %27 : vector<128x128xf32>
    %29 = vector.broadcast %26 : vector<1x128xf32> to vector<128x128xf32>
    %30 = arith.addf %28, %29 : vector<128x128xf32>
    %31 = math.tanh %30 : vector<128x128xf32>
    %c0_16 = arith.constant 0 : index
    %c0_17 = arith.constant 0 : index
    %32 = vector.load %arg5[%c0_16, %c0_17] : memref<128x128xf32, #tpu.memory_space<vmem>>, vector<128x128xf32>
    tpu.vector_store %arg5[%c0_16, %c0_17], %31 {strides = array<i32>} : memref<128x128xf32, #tpu.memory_space<vmem>>, vector<128x128xf32>,
    return
  }
}

</mosaic_0001>

<llo_original>
// kernel: qgnn_layer_v2_forward.1
$region0: #{qgnn_layer_v2_forward.1}
  #allocation0 [shape = 'u32[]', space=smem, size = 0x4, offset = 0x4, fixed_abs, tag = 'smem constant byte address 0x4 - core index']
  #allocation1 [shape = 'u32[144,128]{1,0:T(1,128)}', space=vmem, size = 0x12000, scoped, tag = 'internal scratch']
  %s0 = inlined_call_operand.vmem [shape: bf16[128,128], index: 0, kind: input, shape index: {}]
  %s1 = inlined_call_operand.vmem [shape: bf16[128,128], index: 1, kind: input, shape index: {}]
  %s2 = inlined_call_operand.vmem [shape: bf16[128,128], index: 2, kind: input, shape index: {}]
  %s3 = inlined_call_operand.vmem [shape: f32[1,128], index: 3, kind: input, shape index: {}]
  %s4 = inlined_call_operand.vmem [shape: f32[1,128], index: 4, kind: input, shape index: {}]
  %s5 = inlined_call_operand.vmem [shape: f32[128,128], index: 5, kind: output, shape index: {}]
  %s6 = sld [smem:[#allocation0]]
  $region30: #{qgnn_layer_v2_forward.1} parent=0
    _
  %s8 = ssub.s32 1, %s6
  %s9 = scalar_select 0, %s8, %s6
  // Predicated region
  $region2: #{qgnn_layer_v2_forward.1} parent=0 // pred_check
    _
  $region3: #{qgnn_layer_v2_forward.1} parent=0 // pred_check_branch
    %11 = sbr.rel (0) target = $region5
  $region4: #{qgnn_layer_v2_forward.1} parent=0 // pred_region
    _
  $region5: #{qgnn_layer_v2_forward.1} parent=0 // pred_fallthru
    _
  // Predicated region
  $region6: #{qgnn_layer_v2_forward.1} parent=0 // pred_check
    _
  $region7: #{qgnn_layer_v2_forward.1} parent=0 // pred_check_branch
    %13 = sbr.rel (0) target = $region9
  $region8: #{qgnn_layer_v2_forward.1} parent=0 // pred_region
    _
  $region9: #{qgnn_layer_v2_forward.1} parent=0 // pred_fallthru
    _
  // Predicated region
  $region10: #{qgnn_layer_v2_forward.1} parent=0 // pred_check
    _
  $region11: #{qgnn_layer_v2_forward.1} parent=0 // pred_check_branch
    %15 = sbr.rel (0) target = $region13
  $region12: #{qgnn_layer_v2_forward.1} parent=0 // pred_region
    _
  $region13: #{qgnn_layer_v2_forward.1} parent=0 // pred_fallthru
    _
  // Predicated region
  $region14: #{qgnn_layer_v2_forward.1} parent=0 // pred_check
    _
  $region15: #{qgnn_layer_v2_forward.1} parent=0 // pred_check_branch
    %17 = sbr.rel (0) target = $region17
  $region16: #{qgnn_layer_v2_forward.1} parent=0 // pred_region
    _
  $region17: #{qgnn_layer_v2_forward.1} parent=0 // pred_fallthru
    _
  // Predicated region
  $region18: #{qgnn_layer_v2_forward.1} parent=0 // pred_check
    _
  $region19: #{qgnn_layer_v2_forward.1} parent=0 // pred_check_branch
    %19 = sbr.rel (0) target = $region21
  $region20: #{qgnn_layer_v2_forward.1} parent=0 // pred_region
    _
  $region21: #{qgnn_layer_v2_forward.1} parent=0 // pred_fallthru
    _
  %v21 = vld [vmem:[%s0] sm:$0xf]
  %v22 = vld [vmem:[%s0 + $0x4] sm:$0xf]
  %v23 = vld [vmem:[%s0 + $0x8] sm:$0xf]
  %v24 = vld [vmem:[%s0 + $0xc] sm:$0xf]
  %v25 = vld [vmem:[%s0 + $0x10] sm:$0xf]
  %v26 = vld [vmem:[%s0 + $0x14] sm:$0xf]
  %v27 = vld [vmem:[%s0 + $0x18] sm:$0xf]
  %v28 = vld [vmem:[%s0 + $0x1c] sm:$0xf]
  %v29 = vld [vmem:[%s0 + $0x20] sm:$0xf]
  %v30 = vld [vmem:[%s0 + $0x24] sm:$0xf]
  %v31 = vld [vmem:[%s0 + $0x28] sm:$0xf]
  %v32 = vld [vmem:[%s0 + $0x2c] sm:$0xf]
  %v33 = vld [vmem:[%s0 + $0x30] sm:$0xf]
  %v34 = vld [vmem:[%s0 + $0x34] sm:$0xf]
  %v35 = vld [vmem:[%s0 + $0x38] sm:$0xf]
  %v36 = vld [vmem:[%s0 + $0x3c] sm:$0xf]
  %v37 = vld [vmem:[%s1] sm:$0xf]
  %v38 = vld [vmem:[%s1 + $0x4] sm:$0xf]
  %v39 = vld [vmem:[%s1 + $0x8] sm:$0xf]
  %v40 = vld [vmem:[%s1 + $0xc] sm:$0xf]
  %v41 = vld [vmem:[%s1 + $0x10] sm:$0xf]
  %v42 = vld [vmem:[%s1 + $0x14] sm:$0xf]
  %v43 = vld [vmem:[%s1 + $0x18] sm:$0xf]
  %v44 = vld [vmem:[%s1 + $0x1c] sm:$0xf]
  %v45 = vld [vmem:[%s1 + $0x20] sm:$0xf]
  %v46 = vld [vmem:[%s1 + $0x24] sm:$0xf]
  %v47 = vld [vmem:[%s1 + $0x28] sm:$0xf]
  %v48 = vld [vmem:[%s1 + $0x2c] sm:$0xf]
  %v49 = vld [vmem:[%s1 + $0x30] sm:$0xf]
  %v50 = vld [vmem:[%s1 + $0x34] sm:$0xf]
  %v51 = vld [vmem:[%s1 + $0x38] sm:$0xf]
  %v52 = vld [vmem:[%s1 + $0x3c] sm:$0xf]
  %v69 = vunpack.c.l.b16 %v21
  %v70 = vunpack.c.l.b16 %v22
  %v71 = vunpack.c.l.b16 %v23
  %v72 = vunpack.c.l.b16 %v24
  %v73 = vunpack.c.l.b16 %v25
  %v74 = vunpack.c.l.b16 %v26
  %v75 = vunpack.c.l.b16 %v27
  %v76 = vunpack.c.l.b16 %v28
  %v77 = vunpack.c.l.b16 %v29
  %v78 = vunpack.c.l.b16 %v30
  %v79 = vunpack.c.l.b16 %v31
  %v80 = vunpack.c.l.b16 %v32
  %v81 = vunpack.c.l.b16 %v33
  %v82 = vunpack.c.l.b16 %v34
  %v83 = vunpack.c.l.b16 %v35
  %v84 = vunpack.c.l.b16 %v36
  %v85 = vpack.c.b16 %v70, %v69
  %v86 = vpack.c.b16 %v72, %v71
  %v87 = vpack.c.b16 %v74, %v73
  %v88 = vpack.c.b16 %v76, %v75
  %v89 = vpack.c.b16 %v78, %v77
  %v90 = vpack.c.b16 %v80, %v79
  %v91 = vpack.c.b16 %v82, %v81
  %v92 = vpack.c.b16 %v84, %v83
  %v117 = vunpack.c.l.b16 %v37
  %v118 = vunpack.c.l.b16 %v38
  %v119 = vunpack.c.l.b16 %v39
  %v120 = vunpack.c.l.b16 %v40
  %v121 = vunpack.c.l.b16 %v41
  %v122 = vunpack.c.l.b16 %v42
  %v123 = vunpack.c.l.b16 %v43
  %v124 = vunpack.c.l.b16 %v44
  %v125 = vunpack.c.l.b16 %v45
  %v126 = vunpack.c.l.b16 %v46
  %v127 = vunpack.c.l.b16 %v47
  %v128 = vunpack.c.l.b16 %v48
  %v129 = vunpack.c.l.b16 %v49
  %v130 = vunpack.c.l.b16 %v50
  %v131 = vunpack.c.l.b16 %v51
  %v132 = vunpack.c.l.b16 %v52
  %v133 = vpack.c.b16 %v118, %v117
  %v134 = vpack.c.b16 %v120, %v119
  %v135 = vpack.c.b16 %v122, %v121
  %v136 = vpack.c.b16 %v124, %v123
  %v137 = vpack.c.b16 %v126, %v125
  %v138 = vpack.c.b16 %v128, %v127
  %v139 = vpack.c.b16 %v130, %v129
  %v140 = vpack.c.b16 %v132, %v131
  %149 = vmatprep.subr.bf16.mxu0 0
  %150 = vmatpush1.bf16.msra.mxu0 %v140
  %151 = vmatprep.subr.bf16.mxu0 0
  %152 = vmatpush1.bf16.msra.mxu0 %v139
  %153 = vmatprep.subr.bf16.mxu0 0
  %154 = vmatpush1.bf16.msra.mxu0 %v138
  %155 = vmatprep.subr.bf16.mxu0 0
  %156 = vmatpush1.bf16.msra.mxu0 %v137
  %157 = vmatprep.subr.bf16.mxu0 0
  %158 = vmatpush1.bf16.msra.mxu0 %v136
  %159 = vmatprep.subr.bf16.mxu0 0
  %160 = vmatpush1.bf16.msra.mxu0 %v135
  %161 = vmatprep.subr.bf16.mxu0 0
  %162 = vmatpush1.bf16.msra.mxu0 %v134
  %163 = vmatprep.subr.bf16.mxu0 0
  %164 = vmatpush1.bf16.msra.mxu0 %v133
  %165 = vmatprep.subr.bf16.mxu0 0
  %166 = vmatpush2.bf16.msra.mxu0 0
  %167 = vmatprep.subr.bf16.mxu0 0
  %168 = vmatpush2.bf16.msra.mxu0 0
  %169 = vmatprep.subr.bf16.mxu0 0
  %170 = vmatpush2.bf16.msra.mxu0 0
  %171 = vmatprep.subr.bf16.mxu0 0
  %172 = vmatpush2.bf16.msra.mxu0 0
  %173 = vmatprep.subr.bf16.mxu0 0
  %174 = vmatpush2.bf16.msra.mxu0 0
  %175 = vmatprep.subr.bf16.mxu0 0
  %176 = vmatpush2.bf16.msra.mxu0 0
  %177 = vmatprep.subr.bf16.mxu0 0
  %178 = vmatpush2.bf16.msra.mxu0 0
  %179 = vmatprep.subr.bf16.mxu0 0
  %180 = vmatpush2.bf16.msra.mxu0 0
  %181 = vmatprep.mubr.bf16.mxu0 0
  %182 = vmatmul.mubr.bf16.gmra.mxu0 %v85
  %v183 = vpop.f32.mrf.mxu0
  %v184 = vadd.f32 0.0, %v183
  %v185 = vpop.f32.mrf.mxu0
  %v186 = vpop.f32.mrf.mxu0
  %v187 = vadd.f32 0.0, %v186
  %v188 = vpop.f32.mrf.mxu0
  %189 = vmatprep.mubr.bf16.mxu0 0
  %190 = vmatmul.mubr.bf16.gmra.mxu0 %v86
  %v191 = vpop.f32.mrf.mxu0
  %v192 = vadd.f32 0.0, %v191
  %v193 = vpop.f32.mrf.mxu0
  %v194 = vpop.f32.mrf.mxu0
  %v195 = vadd.f32 0.0, %v194
  %v196 = vpop.f32.mrf.mxu0
  %197 = vmatprep.mubr.bf16.mxu0 0
  %198 = vmatmul.mubr.bf16.gmra.mxu0 %v87
  %v199 = vpop.f32.mrf.mxu0
  %v200 = vadd.f32 0.0, %v199
  %v201 = vpop.f32.mrf.mxu0
  %v202 = vpop.f32.mrf.mxu0
  %v203 = vadd.f32 0.0, %v202
  %v204 = vpop.f32.mrf.mxu0
  %205 = vmatprep.mubr.bf16.mxu0 0
  %206 = vmatmul.mubr.bf16.gmra.mxu0 %v88
  %v207 = vpop.f32.mrf.mxu0
  %v208 = vadd.f32 0.0, %v207
  %v209 = vpop.f32.mrf.mxu0
  %v210 = vpop.f32.mrf.mxu0
  %v211 = vadd.f32 0.0, %v210
  %v212 = vpop.f32.mrf.mxu0
  %213 = vmatprep.mubr.bf16.mxu0 0
  %214 = vmatmul.mubr.bf16.gmra.mxu0 %v89
  %v215 = vpop.f32.mrf.mxu0
  %v216 = vadd.f32 0.0, %v215
  %v217 = vpop.f32.mrf.mxu0
  %v218 = vpop.f32.mrf.mxu0
  %v219 = vadd.f32 0.0, %v218
  %v220 = vpop.f32.mrf.mxu0
  %221 = vmatprep.mubr.bf16.mxu0 0
  %222 = vmatmul.mubr.bf16.gmra.mxu0 %v90
  %v223 = vpop.f32.mrf.mxu0
  %v224 = vadd.f32 0.0, %v223
  %v225 = vpop.f32.mrf.mxu0
  %v226 = vpop.f32.mrf.mxu0
  %v227 = vadd.f32 0.0, %v226
  %v228 = vpop.f32.mrf.mxu0
  %229 = vmatprep.mubr.bf16.mxu0 0
  %230 = vmatmul.mubr.bf16.gmra.mxu0 %v91
  %v231 = vpop.f32.mrf.mxu0
  %v232 = vadd.f32 0.0, %v231
  %v233 = vpop.f32.mrf.mxu0
  %v234 = vpop.f32.mrf.mxu0
  %v235 = vadd.f32 0.0, %v234
  %v236 = vpop.f32.mrf.mxu0
  %237 = vmatprep.mubr.bf16.mxu0 0
  %238 = vmatmul.mubr.bf16.gmra.mxu0 %v92
  %v239 = vpop.f32.mrf.mxu0
  %v240 = vadd.f32 0.0, %v239
  %v241 = vpop.f32.mrf.mxu0
  %v242 = vpop.f32.mrf.mxu0
  %v243 = vadd.f32 0.0, %v242
  %v244 = vpop.f32.mrf.mxu0
  %245 = vdwg.mxu0
  %v246 = vpack.c.bf16 %v187, %v184
  %v247 = vpack.c.bf16 %v195, %v192
  %v248 = vpack.c.bf16 %v203, %v200
  %v249 = vpack.c.bf16 %v211, %v208
  %v250 = vpack.c.bf16 %v219, %v216
  %v251 = vpack.c.bf16 %v227, %v224
  %v252 = vpack.c.bf16 %v235, %v232
  %v253 = vpack.c.bf16 %v243, %v240
  %v254 = vld [vmem:[%s2] sm:$0xf]
  %v255 = vld [vmem:[%s2 + $0x4] sm:$0xf]
  %v256 = vld [vmem:[%s2 + $0x8] sm:$0xf]
  %v257 = vld [vmem:[%s2 + $0xc] sm:$0xf]
  %v258 = vld [vmem:[%s2 + $0x10] sm:$0xf]
  %v259 = vld [vmem:[%s2 + $0x14] sm:$0xf]
  %v260 = vld [vmem:[%s2 + $0x18] sm:$0xf]
  %v261 = vld [vmem:[%s2 + $0x1c] sm:$0xf]
  %v262 = vld [vmem:[%s2 + $0x20] sm:$0xf]
  %v263 = vld [vmem:[%s2 + $0x24] sm:$0xf]
  %v264 = vld [vmem:[%s2 + $0x28] sm:$0xf]
  %v265 = vld [vmem:[%s2 + $0x2c] sm:$0xf]
  %v266 = vld [vmem:[%s2 + $0x30] sm:$0xf]
  %v267 = vld [vmem:[%s2 + $0x34] sm:$0xf]
  %v268 = vld [vmem:[%s2 + $0x38] sm:$0xf]
  %v269 = vld [vmem:[%s2 + $0x3c] sm:$0xf]
  %v286 = vunpack.c.l.b16 %v254
  %v287 = vunpack.c.l.b16 %v255
  %v288 = vunpack.c.l.b16 %v256
  %v289 = vunpack.c.l.b16 %v257
  %v290 = vunpack.c.l.b16 %v258
  %v291 = vunpack.c.l.b16 %v259
  %v292 = vunpack.c.l.b16 %v260
  %v293 = vunpack.c.l.b16 %v261
  %v294 = vunpack.c.l.b16 %v262
  %v295 = vunpack.c.l.b16 %v263
  %v296 = vunpack.c.l.b16 %v264
  %v297 = vunpack.c.l.b16 %v265
  %v298 = vunpack.c.l.b16 %v266
  %v299 = vunpack.c.l.b16 %v267
  %v300 = vunpack.c.l.b16 %v268
  %v301 = vunpack.c.l.b16 %v269
  %v302 = vpack.c.b16 %v287, %v286
  %v303 = vpack.c.b16 %v289, %v288
  %v304 = vpack.c.b16 %v291, %v290
  %v305 = vpack.c.b16 %v293, %v292
  %v306 = vpack.c.b16 %v295, %v294
  %v307 = vpack.c.b16 %v297, %v296
  %v308 = vpack.c.b16 %v299, %v298
  %v309 = vpack.c.b16 %v301, %v300
  %318 = vmatprep.subr.bf16.mxu0 0
  %319 = vmatpush1.bf16.msra.mxu0 %v253
  %320 = vmatprep.subr.bf16.mxu0 0
  %321 = vmatpush1.bf16.msra.mxu0 %v252
  %322 = vmatprep.subr.bf16.mxu0 0
  %323 = vmatpush1.bf16.msra.mxu0 %v251
  %324 = vmatprep.subr.bf16.mxu0 0
  %325 = vmatpush1.bf16.msra.mxu0 %v250
  %326 = vmatprep.subr.bf16.mxu0 0
  %327 = vmatpush1.bf16.msra.mxu0 %v249
  %328 = vmatprep.subr.bf16.mxu0 0
  %329 = vmatpush1.bf16.msra.mxu0 %v248
  %330 = vmatprep.subr.bf16.mxu0 0
  %331 = vmatpush1.bf16.msra.mxu0 %v247
  %332 = vmatprep.subr.bf16.mxu0 0
  %333 = vmatpush1.bf16.msra.mxu0 %v246
  %334 = vmatprep.subr.bf16.mxu0 0
  %335 = vmatpush2.bf16.msra.mxu0 0
  %336 = vmatprep.subr.bf16.mxu0 0
  %337 = vmatpush2.bf16.msra.mxu0 0
  %338 = vmatprep.subr.bf16.mxu0 0
  %339 = vmatpush2.bf16.msra.mxu0 0
  %340 = vmatprep.subr.bf16.mxu0 0
  %341 = vmatpush2.bf16.msra.mxu0 0
  %342 = vmatprep.subr.bf16.mxu0 0
  %343 = vmatpush2.bf16.msra.mxu0 0
  %344 = vmatprep.subr.bf16.mxu0 0
  %345 = vmatpush2.bf16.msra.mxu0 0
  %346 = vmatprep.subr.bf16.mxu0 0
  %347 = vmatpush2.bf16.msra.mxu0 0
  %348 = vmatprep.subr.bf16.mxu0 0
  %349 = vmatpush2.bf16.msra.mxu0 0
  %350 = vmatprep.mubr.bf16.mxu0 0
  %351 = vmatmul.mubr.bf16.gmra.mxu0 %v302
  %v352 = vpop.f32.mrf.mxu0
  %v353 = vadd.f32 0.0, %v352
  %v354 = vpop.f32.mrf.mxu0
  %v355 = vpop.f32.mrf.mxu0
  %v356 = vadd.f32 0.0, %v355
  %v357 = vpop.f32.mrf.mxu0
  %358 = vmatprep.mubr.bf16.mxu0 0
  %359 = vmatmul.mubr.bf16.gmra.mxu0 %v303
  %v360 = vpop.f32.mrf.mxu0
  %v361 = vadd.f32 0.0, %v360
  %v362 = vpop.f32.mrf.mxu0
  %v363 = vpop.f32.mrf.mxu0
  %v364 = vadd.f32 0.0, %v363
  %v365 = vpop.f32.mrf.mxu0
  %366 = vmatprep.mubr.bf16.mxu0 0
  %367 = vmatmul.mubr.bf16.gmra.mxu0 %v304
  %v368 = vpop.f32.mrf.mxu0
  %v369 = vadd.f32 0.0, %v368
  %v370 = vpop.f32.mrf.mxu0
  %v371 = vpop.f32.mrf.mxu0
  %v372 = vadd.f32 0.0, %v371
  %v373 = vpop.f32.mrf.mxu0
  %374 = vmatprep.mubr.bf16.mxu0 0
  %375 = vmatmul.mubr.bf16.gmra.mxu0 %v305
  %v376 = vpop.f32.mrf.mxu0
  %v377 = vadd.f32 0.0, %v376
  %v378 = vpop.f32.mrf.mxu0
  %v379 = vpop.f32.mrf.mxu0
  %v380 = vadd.f32 0.0, %v379
  %v381 = vpop.f32.mrf.mxu0
  %382 = vmatprep.mubr.bf16.mxu0 0
  %383 = vmatmul.mubr.bf16.gmra.mxu0 %v306
  %v384 = vpop.f32.mrf.mxu0
  %v385 = vadd.f32 0.0, %v384
  %v386 = vpop.f32.mrf.mxu0
  %v387 = vpop.f32.mrf.mxu0
  %v388 = vadd.f32 0.0, %v387
  %v389 = vpop.f32.mrf.mxu0
  %390 = vmatprep.mubr.bf16.mxu0 0
  %391 = vmatmul.mubr.bf16.gmra.mxu0 %v307
  %v392 = vpop.f32.mrf.mxu0
  %v393 = vadd.f32 0.0, %v392
  %v394 = vpop.f32.mrf.mxu0
  %v395 = vpop.f32.mrf.mxu0
  %v396 = vadd.f32 0.0, %v395
  %v397 = vpop.f32.mrf.mxu0
  %398 = vmatprep.mubr.bf16.mxu0 0
  %399 = vmatmul.mubr.bf16.gmra.mxu0 %v308
  %v400 = vpop.f32.mrf.mxu0
  %v401 = vadd.f32 0.0, %v400
  %v402 = vpop.f32.mrf.mxu0
  %v403 = vpop.f32.mrf.mxu0
  %v404 = vadd.f32 0.0, %v403
  %v405 = vpop.f32.mrf.mxu0
  %406 = vmatprep.mubr.bf16.mxu0 0
  %407 = vmatmul.mubr.bf16.gmra.mxu0 %v309
  %v408 = vpop.f32.mrf.mxu0
  %v409 = vadd.f32 0.0, %v408
  %v410 = vpop.f32.mrf.mxu0
  %v411 = vpop.f32.mrf.mxu0
  %v412 = vadd.f32 0.0, %v411
  %v413 = vpop.f32.mrf.mxu0
  %414 = vdwg.mxu0
  %v415 = vadd.f32 %v353, %v356
  %v416 = vadd.f32 %v415, %v361
  %v417 = vadd.f32 %v416, %v364
  %v418 = vadd.f32 %v417, %v369
  %v419 = vadd.f32 %v418, %v372
  %v420 = vadd.f32 %v419, %v377
  %v421 = vadd.f32 %v420, %v380
  %v422 = vadd.f32 %v421, %v385
  %v423 = vadd.f32 %v422, %v388
  %v424 = vadd.f32 %v423, %v393
  %v425 = vadd.f32 %v424, %v396
  %v426 = vadd.f32 %v425, %v401
  %v427 = vadd.f32 %v426, %v404
  %v428 = vadd.f32 %v427, %v409
  %v429 = vadd.f32 %v428, %v412
  %v430 = vrot.slane %v429, 4
  %v431 = vadd.f32 %v429, %v430
  %v432 = vrot.slane %v431, 2
  %v433 = vadd.f32 %v431, %v432
  %v434 = vrot.slane %v433, 1
  %v435 = vadd.f32 %v433, %v434
  %v436 = vmul.f32 %v435, 0.015625
  %v437 = vmul.f32 %v353, %v353
  %v438 = vmul.f32 %v356, %v356
  %v439 = vmul.f32 %v361, %v361
  %v440 = vmul.f32 %v364, %v364
  %v441 = vmul.f32 %v369, %v369
  %v442 = vmul.f32 %v372, %v372
  %v443 = vmul.f32 %v377, %v377
  %v444 = vmul.f32 %v380, %v380
  %v445 = vmul.f32 %v385, %v385
  %v446 = vmul.f32 %v388, %v388
  %v447 = vmul.f32 %v393, %v393
  %v448 = vmul.f32 %v396, %v396
  %v449 = vmul.f32 %v401, %v401
  %v450 = vmul.f32 %v404, %v404
  %v451 = vmul.f32 %v409, %v409
  %v452 = vmul.f32 %v412, %v412
  %v453 = vadd.f32 %v437, %v438
  %v454 = vadd.f32 %v453, %v439
  %v455 = vadd.f32 %v454, %v440
  %v456 = vadd.f32 %v455, %v441
  %v457 = vadd.f32 %v456, %v442
  %v458 = vadd.f32 %v457, %v443
  %v459 = vadd.f32 %v458, %v444
  %v460 = vadd.f32 %v459, %v445
  %v461 = vadd.f32 %v460, %v446
  %v462 = vadd.f32 %v461, %v447
  %v463 = vadd.f32 %v462, %v448
  %v464 = vadd.f32 %v463, %v449
  %v465 = vadd.f32 %v464, %v450
  %v466 = vadd.f32 %v465, %v451
  %v467 = vadd.f32 %v466, %v452
  %v468 = vrot.slane %v467, 4
  %v469 = vadd.f32 %v467, %v468
  %v470 = vrot.slane %v469, 2
  %v471 = vadd.f32 %v469, %v470
  %v472 = vrot.slane %v471, 1
  %v473 = vadd.f32 %v471, %v472
  %v474 = vmul.f32 %v473, 0.015625
  %v475 = vmul.f32 %v436, %v436
  %v476 = vsub.f32 %v474, %v475
  %v477 = vmax.f32 %v476, 0.0
  %v478 = vld [vmem:[%s3] sm:$0x1]
  %v479 = vadd.f32 %v477, 1e-05
  %v480 = vrsqrt.pop %v479
  %v481 = vmul.f32 %v478, %v480
  %v482 = vld [vmem:[%s4] sm:$0x1]
  %v483 = vmul.f32 %v436, %v481
  %v484 = vsub.f32 %v482, %v483
  %v486 = vlaneseq
  %v487 = vshrl.u32 %v486, 7
  %v488 = vsub.s32 0, %v487
  %v489 = vrot.slane %v481, %v488
  %v491 = vmul.f32 %v353, %v489
  %v492 = vmul.f32 %v356, %v489
  %v493 = vmul.f32 %v361, %v489
  %v494 = vmul.f32 %v364, %v489
  %v495 = vmul.f32 %v369, %v489
  %v496 = vmul.f32 %v372, %v489
  %v497 = vmul.f32 %v377, %v489
  %v498 = vmul.f32 %v380, %v489
  %v499 = vmul.f32 %v385, %v489
  %v500 = vmul.f32 %v388, %v489
  %v501 = vmul.f32 %v393, %v489
  %v502 = vmul.f32 %v396, %v489
  %v503 = vmul.f32 %v401, %v489
  %v504 = vmul.f32 %v404, %v489
  %v505 = vmul.f32 %v409, %v489
  %v506 = vmul.f32 %v412, %v489
  %v508 = vlaneseq
  %v509 = vshrl.u32 %v508, 7
  %v510 = vsub.s32 0, %v509
  %v511 = vrot.slane %v484, %v510
  %v513 = vadd.f32 %v491, %v511
  %v514 = vadd.f32 %v492, %v511
  %v515 = vadd.f32 %v493, %v511
  %v516 = vadd.f32 %v494, %v511
  %v517 = vadd.f32 %v495, %v511
  %v518 = vadd.f32 %v496, %v511
  %v519 = vadd.f32 %v497, %v511
  %v520 = vadd.f32 %v498, %v511
  %v521 = vadd.f32 %v499, %v511
  %v522 = vadd.f32 %v500, %v511
  %v523 = vadd.f32 %v501, %v511
  %v524 = vadd.f32 %v502, %v511
  %v525 = vadd.f32 %v503, %v511
  %v526 = vadd.f32 %v504, %v511
  %v527 = vadd.f32 %v505, %v511
  %v528 = vadd.f32 %v506, %v511
  %v529 = vtanh.pop %v513
  %v530 = vtanh.pop %v514
  %v531 = vtanh.pop %v515
  %v532 = vtanh.pop %v516
  %v533 = vtanh.pop %v517
  %v534 = vtanh.pop %v518
  %v535 = vtanh.pop %v519
  %v536 = vtanh.pop %v520
  %v537 = vtanh.pop %v521
  %v538 = vtanh.pop %v522
  %v539 = vtanh.pop %v523
  %v540 = vtanh.pop %v524
  %v541 = vtanh.pop %v525
  %v542 = vtanh.pop %v526
  %v543 = vtanh.pop %v527
  %v544 = vtanh.pop %v528
  %545 = vst [vmem:[%s5] sm:$0xff] %v529
  %546 = vst [vmem:[%s5 + $0x8] sm:$0xff] %v530
  %547 = vst [vmem:[%s5 + $0x10] sm:$0xff] %v531
  %548 = vst [vmem:[%s5 + $0x18] sm:$0xff] %v532
  %549 = vst [vmem:[%s5 + $0x20] sm:$0xff] %v533
  %550 = vst [vmem:[%s5 + $0x28] sm:$0xff] %v534
  %551 = vst [vmem:[%s5 + $0x30] sm:$0xff] %v535
  %552 = vst [vmem:[%s5 + $0x38] sm:$0xff] %v536
  %553 = vst [vmem:[%s5 + $0x40] sm:$0xff] %v537
  %554 = vst [vmem:[%s5 + $0x48] sm:$0xff] %v538
  %555 = vst [vmem:[%s5 + $0x50] sm:$0xff] %v539
  %556 = vst [vmem:[%s5 + $0x58] sm:$0xff] %v540
  %557 = vst [vmem:[%s5 + $0x60] sm:$0xff] %v541
  %558 = vst [vmem:[%s5 + $0x68] sm:$0xff] %v542
  %559 = vst [vmem:[%s5 + $0x70] sm:$0xff] %v543
  %560 = vst [vmem:[%s5 + $0x78] sm:$0xff] %v544
  // Predicated region
  $region22: #{qgnn_layer_v2_forward.1} parent=0 // pred_check
    _
  $region23: #{qgnn_layer_v2_forward.1} parent=0 // pred_check_branch
    %562 = sbr.rel (0) target = $region25
  $region24: #{qgnn_layer_v2_forward.1} parent=0 // pred_region
    _
  $region25: #{qgnn_layer_v2_forward.1} parent=0 // pred_fallthru
    _
  // Predicated region
  $region26: #{qgnn_layer_v2_forward.1} parent=0 // pred_check
    _
  $region27: #{qgnn_layer_v2_forward.1} parent=0 // pred_check_branch
    %564 = sbr.rel (0) target = $region29
  $region28: #{qgnn_layer_v2_forward.1} parent=0 // pred_region
    _
  $region29: #{qgnn_layer_v2_forward.1} parent=0 // pred_fallthru
    _

</llo_original>
